<compile_context>
chip_gen: v7x
topology: tpu7x:2x2x1
jax: 0.10.0
libtpu: 0.0.40
codegen_flags: <defaults>
</compile_context>

<pallas_src>
import functools

import jax
import jax.numpy as jnp
from jax import lax
from jax.experimental import pallas as pl
from jax.experimental.pallas import tpu as pltpu

_LANES = 128
_SUBLANES = 8
_ELEMS_PER_GROUP = _SUBLANES * _LANES  # 1024 = one f32 vreg


def _loss_offset_kernel(pred_ref, kp_ref, out_ref, *, inv_R, n_groups,
                        g_tile, n_steps, mask_rows):
    """Reduce one (g_tile, 8, 128) tile into the resident (1, 8, 128) block."""
    # Output block is resident across the reduction ("arbitrary") axis; zero it
    # on the first step of each parallel slice.
    @pl.when(pl.program_id(1) == 0)
    def _init():
        out_ref[...] = jnp.zeros_like(out_ref)

    pred = pred_ref[...].astype(jnp.float32)          # (g_tile, 8, 128)
    kp = kp_ref[...].astype(jnp.float32)

    q = kp * jnp.float32(inv_R)                       # constant multiply, no divide
    gt = q - jnp.round(q)                             # round-half-to-even == torch.round
    d = pred - gt
    ad = jnp.abs(d)
    # 2x smooth-L1 with beta=1 (the 0.5 is folded into the final wrapper scale):
    #   2*smooth_l1(d) = d^2 if |d| < 1 else 2*|d| - 1
    per = jnp.where(ad < 1.0, d * d, 2.0 * ad - 1.0)

    if mask_rows:
        # Grid over-covers the group axis (partial last tile and/or clamped
        # out-of-range tiles): zero every group past the true end.
        start = (pl.program_id(0) * n_steps + pl.program_id(1)) * g_tile
        row = lax.broadcasted_iota(jnp.int32, per.shape, 0) + start
        per = jnp.where(row < n_groups, per, 0.0)

    # Hierarchical reduce: collapse the tile to one vreg and accumulate.
    out_ref[...] += jnp.sum(per, axis=0, keepdims=True)


def _smooth_l1_2x_sum(pred, kp, inv_R):
    """Pure-JAX 2x-scaled smooth-L1 sum (only used for a <1024-element tail)."""
    q = kp.astype(jnp.float32) * jnp.float32(inv_R)
    gt = q - jnp.round(q)
    d = pred.astype(jnp.float32) - gt
    ad = jnp.abs(d)
    return jnp.sum(jnp.where(ad < 1.0, d * d, 2.0 * ad - 1.0))


def _default_n_split():
    """2 only on devices with two TensorCores (v4/v5p megacore, v7x); else 1."""
    try:
        kind = jax.devices()[0].device_kind.lower()
    except Exception:
        return 1
    if any(tag in kind for tag in ("v7", "v4", "v5p")):
        return 2
    return 1


def loss_offset(offset_pred, keypoints, R=4, *, group_tile=None, n_split=None):
    """Pallas TPU implementation of Loss_Offset.forward."""
    assert offset_pred.shape == keypoints.shape
    n_batch = offset_pred.shape[0]
    n_elems = offset_pred.size
    inv_R = 1.0 / R

    flat_pred = offset_pred.reshape(-1)   # contiguous reshape: free
    flat_kp = keypoints.reshape(-1)

    n_groups = n_elems // _ELEMS_PER_GROUP
    tail = n_elems - n_groups * _ELEMS_PER_GROUP
    n_main = n_groups * _ELEMS_PER_GROUP

    total = jnp.float32(0.0)

    if n_groups > 0:
        if tail == 0:
            main_pred, main_kp = flat_pred, flat_kp                 # zero-copy
        else:
            # Ragged: kernel consumes the exactly-divisible prefix; remainder
            # is handled below in plain JAX (no full-array pad pass).
            # TODO(synk): try CompilerParams(allow_input_fusion=[True, True]) to
            # let XLA fuse this slice into the pallas input stream.
            main_pred = lax.slice(flat_pred, (0,), (n_main,))
            main_kp = lax.slice(flat_kp, (0,), (n_main,))
        pred_slab = main_pred.reshape(n_groups, _SUBLANES, _LANES)
        kp_slab = main_kp.reshape(n_groups, _SUBLANES, _LANES)

        # ---- tiling plan (all static Python ints) ---------------------------
        comb_bytes = pred_slab.dtype.itemsize + kp_slab.dtype.itemsize
        # ~8 MiB of combined input per grid step (g_tile = 1024 for f32, 2048
        # for bf16); also the cap so double-buffered inputs stay <= 16 MiB and
        # fit every generation's VMEM (incl. v7x's 64 MiB physical).
        g_cap = max(1, (8 << 20) // (_ELEMS_PER_GROUP * comb_bytes))
        g_tile = g_cap if group_tile is None else max(1, min(group_tile, g_cap))
        g_tile = min(g_tile, n_groups)
        n_tiles = pl.cdiv(n_groups, g_tile)

        split = _default_n_split() if n_split is None else max(1, int(n_split))
        split = min(split, n_tiles)
        n_steps = pl.cdiv(n_tiles, split)

        # Any over-coverage of the group axis => mask in-kernel.
        mask_rows = (split * n_steps * g_tile) != n_groups

        def in_map(c, s):
            # Clamp tiles past the end (split may not divide n_tiles); those
            # tiles are fully masked in-kernel so they contribute zero.
            t = jnp.minimum(c * n_steps + s, n_tiles - 1)
            return (t, 0, 0)

        kernel = functools.partial(
            _loss_offset_kernel, inv_R=inv_R, n_groups=n_groups,
            g_tile=g_tile, n_steps=n_steps, mask_rows=mask_rows)

        block_in_bytes = g_tile * _ELEMS_PER_GROUP * comb_bytes
        # double-buffered inputs + margin for the output block / compiler scratch
        vmem_limit = int(min(max(2 * block_in_bytes + (8 << 20), 16 << 20),
                             48 << 20))

        partials = pl.pallas_call(
            kernel,
            out_shape=jax.ShapeDtypeStruct((split, _SUBLANES, _LANES),
                                           jnp.float32),
            grid_spec=pltpu.PrefetchScalarGridSpec(
                num_scalar_prefetch=0,
                grid=(split, n_steps),
                in_specs=[
                    pl.BlockSpec((g_tile, _SUBLANES, _LANES), in_map),
                    pl.BlockSpec((g_tile, _SUBLANES, _LANES), in_map),
                ],
                out_specs=pl.BlockSpec((1, _SUBLANES, _LANES),
                                       lambda c, s: (c, 0, 0)),
            ),
            # TODO(synk): on v7x confirm in xprof that "parallel" shards the
            # leading axis across both TensorCores; if not, switch that axis to
            # pltpu.CORE_PARALLEL.
            compiler_params=pltpu.CompilerParams(
                dimension_semantics=("parallel", "arbitrary"),
                vmem_limit_bytes=vmem_limit),
        )(pred_slab, kp_slab)

        total = total + jnp.sum(partials)

    if tail > 0:
        tail_pred = lax.slice(flat_pred, (n_main,), (n_elems,))
        tail_kp = lax.slice(flat_kp, (n_main,), (n_elems,))
        total = total + _smooth_l1_2x_sum(tail_pred, tail_kp, inv_R)

    # mean over elements, divide by N, and the 0.5 folded out of the kernel:
    #   * 0.5 / (n_elems * n_batch)
    return total * jnp.float32(0.5 / (n_elems * n_batch))


def loss_offset_ref(offset_pred, keypoints, R=4):
    """Pure-JAX reference mirroring the PyTorch module."""
    q = keypoints.astype(jnp.float32) / R
    gt = q - jnp.round(q)
    d = offset_pred.astype(jnp.float32) - gt
    ad = jnp.abs(d)
    per = jnp.where(ad < 1.0, 0.5 * d * d, ad - 0.5)
    return jnp.mean(per) / offset_pred.shape[0]


if __name__ == "__main__":
    key = jax.random.PRNGKey(0)
    k1, k2, k3, k4, k5, k6 = jax.random.split(key, 6)

    # 1) Small, lane-aligned case (N=2 samples, K=256 keypoints, 2D offsets):
    #    1024 elements => zero-copy slab, single tile, default plan.
    N, K = 2, 256
    offset_pred = jax.random.uniform(k1, (N, K, 2), jnp.float32,
                                     minval=-0.5, maxval=0.5)
    keypoints = jax.random.uniform(k2, (N, K, 2), jnp.float32,
                                   minval=0.0, maxval=64.0)
    out = jax.block_until_ready(loss_offset(offset_pred, keypoints, R=4))
    ref = loss_offset_ref(offset_pred, keypoints, R=4)
    assert bool(jnp.allclose(out, ref, rtol=1e-5, atol=1e-6)), (out, ref)

    # 2) Ragged case exercising multi-tile accumulation, the parallel split,
    #    the clamped+masked over-coverage path and the pure-JAX tail.
    #    5200 elements => 5 groups (tail=80), forced tiny tiles / split=2.
    N2, K2 = 2, 1300
    pred2 = jax.random.uniform(k3, (N2, K2, 2), jnp.float32,
                               minval=-2.0, maxval=2.0)
    kp2 = jax.random.uniform(k4, (N2, K2, 2), jnp.float32,
                             minval=0.0, maxval=256.0)
    out2 = jax.block_until_ready(
        loss_offset(pred2, kp2, R=4, group_tile=2, n_split=2))
    ref2 = loss_offset_ref(pred2, kp2, R=4)
    assert bool(jnp.allclose(out2, ref2, rtol=1e-5, atol=1e-6)), (out2, ref2)

    # 3) bf16 inputs stay bf16 in HBM (kernel casts to f32 in VMEM).
    pred3 = jax.random.uniform(k5, (N2, K2, 2), jnp.float32,
                               minval=-2.0, maxval=2.0).astype(jnp.bfloat16)
    kp3 = jax.random.uniform(k6, (N2, K2, 2), jnp.float32,
                             minval=0.0, maxval=256.0).astype(jnp.bfloat16)
    out3 = jax.block_until_ready(loss_offset(pred3, kp3, R=4))
    ref3 = loss_offset_ref(pred3, kp3, R=4)
    assert bool(jnp.allclose(out3, ref3, rtol=1e-4, atol=1e-6)), (out3, ref3)

    print("KERNEL_OK")
</pallas_src>

<mosaic_0001>
module attributes {stable_mosaic.version = 11 : i64} {
  func.func @_loss_offset_kernel(%arg0: i32, %arg1: i32, %arg2: memref<1x8x128xf32, #tpu.memory_space<vmem>>, %arg3: memref<1x8x128xf32, #tpu.memory_space<vmem>>, %arg4: memref<1x8x128xf32, #tpu.memory_space<vmem>>) attributes {dimension_semantics = [#tpu.dimension_semantics<parallel>, #tpu.dimension_semantics<arbitrary>], iteration_bounds = array<i64: 1, 1>, scalar_prefetch = 0 : i64, scratch_operands = 0 : i64, tpu.core_type = #tpu.core_type<tc>, window_params = [{transform_indices = @transform_0, window_bounds = array<i64: 1, 8, 128>}, {transform_indices = @transform_1, window_bounds = array<i64: 1, 8, 128>}, {transform_indices = @transform_2, window_bounds = array<i64: 1, 8, 128>}]} {
    %c0_i32 = arith.constant 0 : i32
    %0 = arith.cmpi eq, %arg1, %c0_i32 : i32
    %1 = arith.extui %0 : i1 to i32
    %c0_i32_0 = arith.constant 0 : i32
    %2 = arith.cmpi ne, %1, %c0_i32_0 : i32
    scf.if %2 {
      %cst_16 = arith.constant 0.000000e+00 : f32
      %24 = vector.broadcast %cst_16 : f32 to vector<1x8x128xf32>
      %c0_17 = arith.constant 0 : index
      %c0_18 = arith.constant 0 : index
      %c0_19 = arith.constant 0 : index
      %25 = vector.load %arg4[%c0_17, %c0_18, %c0_19] : memref<1x8x128xf32, #tpu.memory_space<vmem>>, vector<1x8x128xf32>
      tpu.vector_store %arg4[%c0_17, %c0_18, %c0_19], %24 {strides = array<i32>} : memref<1x8x128xf32, #tpu.memory_space<vmem>>, vector<1x8x128xf32>,
    } else {
    }
    %c0 = arith.constant 0 : index
    %c0_1 = arith.constant 0 : index
    %c0_2 = arith.constant 0 : index
    %3 = vector.load %arg2[%c0, %c0_1, %c0_2] : memref<1x8x128xf32, #tpu.memory_space<vmem>>, vector<1x8x128xf32>
    %c0_3 = arith.constant 0 : index
    %c0_4 = arith.constant 0 : index
    %c0_5 = arith.constant 0 : index
    %4 = vector.load %arg3[%c0_3, %c0_4, %c0_5] : memref<1x8x128xf32, #tpu.memory_space<vmem>>, vector<1x8x128xf32>
    %cst = arith.constant 2.500000e-01 : f32
    %5 = vector.broadcast %cst : f32 to vector<1x8x128xf32>
    %6 = arith.mulf %4, %5 : vector<1x8x128xf32>
    %7 = math.roundeven %6 : vector<1x8x128xf32>
    %8 = arith.subf %6, %7 : vector<1x8x128xf32>
    %9 = arith.subf %3, %8 : vector<1x8x128xf32>
    %10 = math.absf %9 : vector<1x8x128xf32>
    %cst_6 = arith.constant 1.000000e+00 : f32
    %11 = vector.broadcast %cst_6 : f32 to vector<1x8x128xf32>
    %12 = arith.cmpf olt, %10, %11 : vector<1x8x128xf32>
    %13 = arith.mulf %9, %9 : vector<1x8x128xf32>
    %cst_7 = arith.constant 2.000000e+00 : f32
    %14 = vector.broadcast %cst_7 : f32 to vector<1x8x128xf32>
    %15 = arith.mulf %14, %10 : vector<1x8x128xf32>
    %cst_8 = arith.constant 1.000000e+00 : f32
    %16 = vector.broadcast %cst_8 : f32 to vector<1x8x128xf32>
    %17 = arith.subf %15, %16 : vector<1x8x128xf32>
    %18 = arith.select %12, %13, %17 : vector<1x8x128xi1>, vector<1x8x128xf32>
    %c0_9 = arith.constant 0 : index
    %c0_10 = arith.constant 0 : index
    %c0_11 = arith.constant 0 : index
    %19 = vector.load %arg4[%c0_9, %c0_10, %c0_11] : memref<1x8x128xf32, #tpu.memory_space<vmem>>, vector<1x8x128xf32>
    %cst_12 = arith.constant dense<0.000000e+00> : vector<8x128xf32>
    %20 = vector.multi_reduction <add>, %18, %cst_12 [0] : vector<1x8x128xf32> to vector<8x128xf32>
    %21 = vector.shape_cast %20 : vector<8x128xf32> to vector<1x8x128xf32>
    %22 = arith.addf %19, %21 : vector<1x8x128xf32>
    %c0_13 = arith.constant 0 : index
    %c0_14 = arith.constant 0 : index
    %c0_15 = arith.constant 0 : index
    %23 = vector.load %arg4[%c0_13, %c0_14, %c0_15] : memref<1x8x128xf32, #tpu.memory_space<vmem>>, vector<1x8x128xf32>
    tpu.vector_store %arg4[%c0_13, %c0_14, %c0_15], %22 {strides = array<i32>} : memref<1x8x128xf32, #tpu.memory_space<vmem>>, vector<1x8x128xf32>,
    return
  }
  func.func @transform_0(%arg0: i32, %arg1: i32) -> (i32, i32, i32) {
    %c1_i32 = arith.constant 1 : i32
    %0 = arith.muli %arg0, %c1_i32 : i32
    %1 = arith.addi %0, %arg1 : i32
    %c0_i32 = arith.constant 0 : i32
    %2 = arith.minsi %1, %c0_i32 : i32
    %c0_i32_0 = arith.constant 0 : i32
    %c0_i32_1 = arith.constant 0 : i32
    %c0_i32_2 = arith.constant 0 : i32
    return %2, %c0_i32_0, %c0_i32_1 : i32, i32, i32
  }
  func.func @transform_1(%arg0: i32, %arg1: i32) -> (i32, i32, i32) {
    %c1_i32 = arith.constant 1 : i32
    %0 = arith.muli %arg0, %c1_i32 : i32
    %1 = arith.addi %0, %arg1 : i32
    %c0_i32 = arith.constant 0 : i32
    %2 = arith.minsi %1, %c0_i32 : i32
    %c0_i32_0 = arith.constant 0 : i32
    %c0_i32_1 = arith.constant 0 : i32
    %c0_i32_2 = arith.constant 0 : i32
    return %2, %c0_i32_0, %c0_i32_1 : i32, i32, i32
  }
  func.func @transform_2(%arg0: i32, %arg1: i32) -> (i32, i32, i32) {
    %c0_i32 = arith.constant 0 : i32
    %c0_i32_0 = arith.constant 0 : i32
    %c0_i32_1 = arith.constant 0 : i32
    return %arg0, %c0_i32, %c0_i32_0 : i32, i32, i32
  }
}

</mosaic_0001>

<llo_original>
// kernel: tpu_custom_call.1
$region0: #{tpu_custom_call.1}
  #allocation0 [shape = 'u32[]', space=smem, size = 0x4, offset = 0x4, fixed_abs, tag = 'smem constant byte address 0x4 - core index']
  #allocation1 [shape = 'u32[144,128]{1,0:T(1,128)}', space=vmem, size = 0x12000, scoped, tag = 'internal scratch']
  %s0 = inlined_call_operand.hbm [shape: f32[1,8,128], index: 0, kind: input, shape index: {}]
  %s1 = inlined_call_operand.hbm [shape: f32[1,8,128], index: 1, kind: input, shape index: {}]
  %s2 = inlined_call_operand.hbm [shape: f32[1,8,128], index: 2, kind: output, shape index: {}]
  %s3 = sld [smem:[#allocation0]]
  $region30: #{tpu_custom_call.1} parent=0
    _
  %s5 = ssub.s32 1, %s3
  %s6 = scalar_select 0, %s5, %s3
  $region1: #{tpu_custom_call.1} parent=0
    #allocation2 [shape = 'u8[4096]{0}', space=vmem, size = 0x1000, scoped, tag = 'input window, operand 0, single buffered']
    #allocation3 [shape = 's32[1]{0}', space=sflag, size = 0x4, scoped, tag = 'scoped memory for tpu_custom_call.1']
    #allocation4 [shape = 's32[1]{0}', space=sflag, size = 0x4, scoped, tag = 'scoped memory for tpu_custom_call.1']
    #allocation5 [shape = 'u8[4096]{0}', space=vmem, size = 0x1000, scoped, tag = 'input window, operand 1, single buffered']
    #allocation6 [shape = 's32[1]{0}', space=sflag, size = 0x4, scoped, tag = 'scoped memory for tpu_custom_call.1']
    #allocation7 [shape = 'u8[4096]{0}', space=vmem, size = 0x1000, scoped, tag = 'output window, operand 0, single buffered']
    %7 = vsyncpa [#allocation3], 0
    %8 = vsyncpa [#allocation6], 0
    %9 = vsyncpa [#allocation4], 0
    // Predicated region
    $region2: #{tpu_custom_call.1} parent=1 // pred_check
      _
    $region3: #{tpu_custom_call.1} parent=1 // pred_check_branch
      %11 = sbr.rel (0) target = $region5
    $region4: #{tpu_custom_call.1} parent=1 // pred_region
      %s12 = sadd.s32 0, 0
      %p13 = scmp.lt.s32.totalorder %s12, 0
      %s14 = scalar_select %p13, %s12, 0
      %s16 = ssub.s32 128, 128
      %17 = vsyncadd [#allocation3], %s16
      %s18 = smul.addr %s14, 128
      %s19 = scalar_lea.hbm %s0, %s18
      %s21 = sshll.u32 [#allocation2], 4
      %s22 = int_to_ptr.vmem [resolvable:$true] %s21
      %24 = dma.hbm_to_vmem [thread:$0]  %s19, 128, %s22, [#allocation3]
    $region5: #{tpu_custom_call.1} parent=1 // pred_fallthru
      _
    // Predicated region
    $region6: #{tpu_custom_call.1} parent=1 // pred_check
      _
    $region7: #{tpu_custom_call.1} parent=1 // pred_check_branch
      %26 = sbr.rel (0) target = $region9
    $region8: #{tpu_custom_call.1} parent=1 // pred_region
      %s27 = sadd.s32 0, 0
      %p28 = scmp.lt.s32.totalorder %s27, 0
      %s29 = scalar_select %p28, %s27, 0
      %s31 = ssub.s32 128, 128
      %32 = vsyncadd [#allocation6], %s31
      %s33 = smul.addr %s29, 128
      %s34 = scalar_lea.hbm %s1, %s33
      %s36 = sshll.u32 [#allocation5], 4
      %s37 = int_to_ptr.vmem [resolvable:$true] %s36
      %39 = dma.hbm_to_vmem [thread:$0]  %s34, 128, %s37, [#allocation6]
    $region9: #{tpu_custom_call.1} parent=1 // pred_fallthru
      _
    // Predicated region
    $region10: #{tpu_custom_call.1} parent=1 // pred_check
      _
    $region11: #{tpu_custom_call.1} parent=1 // pred_check_branch
      %41 = sbr.rel (0) target = $region13
    $region12: #{tpu_custom_call.1} parent=1 // pred_region
      %42 = dma.done [#allocation3], 128
    $region13: #{tpu_custom_call.1} parent=1 // pred_fallthru
      _
    // Predicated region
    $region14: #{tpu_custom_call.1} parent=1 // pred_check
      _
    $region15: #{tpu_custom_call.1} parent=1 // pred_check_branch
      %44 = sbr.rel (0) target = $region17
    $region16: #{tpu_custom_call.1} parent=1 // pred_region
      %45 = dma.done [#allocation6], 128
    $region17: #{tpu_custom_call.1} parent=1 // pred_fallthru
      _
    %s46 = sadd.s32 0, 0
    %p47 = scmp.lt.s32.totalorder %s46, 0
    %s48 = scalar_select %p47, %s46, 0
    %s49 = sadd.s32 0, 0
    %p50 = scmp.lt.s32.totalorder %s49, 0
    %s51 = scalar_select %p50, %s49, 0
    %p52 = scmp.eq.s32.totalorder 0, 0
    // Predicated region
    $region18: #{tpu_custom_call.1} parent=1 // pred_check
      %p53 = pneg %p52
    $region19: #{tpu_custom_call.1} parent=1 // pred_check_branch
      %55 = sbr.rel (%p53) target = $region21
    $region20: #{tpu_custom_call.1} parent=1 // pred_region
      %56 = vst [vmem:[#allocation7] sm:$0xff] 0.0
    $region21: #{tpu_custom_call.1} parent=1 // pred_fallthru
      _
    %v57 = vld [vmem:[#allocation2] sm:$0xff]
    %v58 = vld [vmem:[#allocation5] sm:$0xff]
    %v59 = vmul.f32 %v58, 0.25
    %v60 = vround.ne.pseudo %v59
    %v61 = vsub.f32 %v59, %v60
    %v62 = vsub.f32 %v57, %v61
    %v63 = vand.u32 2147483647, %v62
    %vm64 = vcmp.lt.f32.partialorder %v63, 1.0
    %v65 = vmul.f32 %v62, %v62
    %v66 = vmul.f32 %v63, 2.0
    %v67 = vsub.f32 %v66, 1.0
    %v68 = vsel %vm64, %v65, %v67
    %v69 = vld [vmem:[#allocation7] sm:$0xff]
    %v70 = vadd.f32 %v68, 0.0
    %v71 = vadd.f32 %v69, %v70
    %72 = vst [vmem:[#allocation7] sm:$0xff] %v71
    // Predicated region
    $region22: #{tpu_custom_call.1} parent=1 // pred_check
      _
    $region23: #{tpu_custom_call.1} parent=1 // pred_check_branch
      %74 = sbr.rel (0) target = $region25
    $region24: #{tpu_custom_call.1} parent=1 // pred_region
      %s76 = ssub.s32 128, 128
      %77 = vsyncadd [#allocation4], %s76
      %s79 = sshll.u32 [#allocation7], 4
      %s80 = int_to_ptr.vmem [resolvable:$true] %s79
      %82 = dma.vmem_to_hbm [thread:$0]  %s80, 128, %s2, [#allocation4]
    $region25: #{tpu_custom_call.1} parent=1 // pred_fallthru
      _
    // Predicated region
    $region26: #{tpu_custom_call.1} parent=1 // pred_check
      _
    $region27: #{tpu_custom_call.1} parent=1 // pred_check_branch
      %84 = sbr.rel (0) target = $region29
    $region28: #{tpu_custom_call.1} parent=1 // pred_region
      %85 = dma.done [#allocation4], 128
    $region29: #{tpu_custom_call.1} parent=1 // pred_fallthru
      _
    %86 = vsyncpa [#allocation3], 1
    %87 = vsyncpa [#allocation6], 1
    %88 = vsyncpa [#allocation4], 1

</llo_original>
